<compile_context>
chip_gen: v6e
topology: v6e:2x2x1
jax: 0.10.0
libtpu: 0.0.40
codegen_flags: <defaults>
</compile_context>

<pallas_src>
import functools

import jax
import jax.numpy as jnp
from jax.experimental import pallas as pl
from jax.experimental.pallas import tpu as pltpu


def _hbm_identity_copy_kernel(x_hbm_ref, o_hbm_ref, copy_sem):
    # Abstract forward defines no transformation: one whole-array HBM->HBM DMA.
    cp = pltpu.make_async_copy(x_hbm_ref, o_hbm_ref, copy_sem)
    cp.start()
    cp.wait()


@functools.partial(jax.jit, static_argnames=("copy_via_pallas",))
def base_model_forward(time_series: jax.Array,
                       node_feature: jax.Array,
                       copy_via_pallas: bool = True):
    """Pallas 'forward' matching BaseModel's abstract (identity) signature.

    time_series: [B, T, N]   node_feature: [N, F]
    Returns (time_series, node_feature) unchanged.  When `copy_via_pallas` is True the
    time_series output is produced by a single HBM->HBM DMA inside a Pallas kernel;
    when False the array is returned as-is (the review's preferred zero-cost path).
    """
    if not copy_via_pallas:
        return time_series, node_feature

    nbytes = time_series.size * time_series.dtype.itemsize
    ts_out = pl.pallas_call(
        _hbm_identity_copy_kernel,
        out_shape=jax.ShapeDtypeStruct(time_series.shape, time_series.dtype),
        # Raw HBM refs: no auto-tiling, no VMEM staging, no (8,128) padding needed.
        in_specs=[pl.BlockSpec(memory_space=pl.ANY)],
        out_specs=pl.BlockSpec(memory_space=pl.ANY),
        scratch_shapes=[pltpu.SemaphoreType.DMA(())],
        # Accurate picture for XLA's scheduler: pure memcpy, read + write of the array.
        cost_estimate=pl.CostEstimate(
            flops=0, transcendentals=0, bytes_accessed=2 * nbytes),
    )(time_series)

    # node_feature is tiny ([N, F]) and the abstract forward defines no compute on it.
    return ts_out, node_feature


if __name__ == "__main__":
    key = jax.random.PRNGKey(0)
    k_ts, k_nf = jax.random.split(key)

    # Small shapes consistent with the (time_series, node_feature) signature:
    #   batch=2, seq=8, nodes=4, hidden=32
    time_series = jax.random.normal(k_ts, (2, 8, 4), dtype=jnp.float32)
    node_feature = jax.random.normal(k_nf, (4, 32), dtype=jnp.float32)

    ts_out, nf_out = base_model_forward(time_series, node_feature)
    jax.block_until_ready((ts_out, nf_out))

    # Identity semantics check (the abstract forward defines no computation).
    assert ts_out.shape == time_series.shape and ts_out.dtype == time_series.dtype
    assert jnp.allclose(ts_out, time_series)
    assert jnp.allclose(nf_out, node_feature)

    print("KERNEL_OK")
</pallas_src>

<mosaic_0001>
module attributes {stable_mosaic.version = 11 : i64} {
  func.func @_hbm_identity_copy_kernel(%arg0: memref<2x8x4xf32, #tpu.memory_space<any>>, %arg1: memref<2x8x4xf32, #tpu.memory_space<any>>, %arg2: memref<!tpu.dma_semaphore, #tpu.memory_space<semaphore_mem>>) attributes {dimension_semantics = [], scalar_prefetch = 0 : i64, scratch_operands = 1 : i64, tpu.core_type = #tpu.core_type<tc>} {
    tpu.enqueue_dma source(%arg0 : memref<2x8x4xf32, #tpu.memory_space<any>>) target(%arg1 : memref<2x8x4xf32, #tpu.memory_space<any>>) target_semaphore(%arg2 : memref<!tpu.dma_semaphore, #tpu.memory_space<semaphore_mem>>)
    tpu.wait_dma2 semaphore(%arg2 : memref<!tpu.dma_semaphore, #tpu.memory_space<semaphore_mem>>) src(%arg0 : memref<2x8x4xf32, #tpu.memory_space<any>>) dst(%arg1 : memref<2x8x4xf32, #tpu.memory_space<any>>)
    return
  }
}

</mosaic_0001>

<llo_original>
// kernel: base_model_forward.1
$region0: #{base_model_forward.1}
  #allocation0 [shape = 'u32[]', space=smem, size = 0x4, offset = 0x4, fixed_abs, tag = 'smem constant byte address 0x4 - core index']
  #allocation1 [shape = 'u32[144,128]{1,0:T(1,128)}', space=vmem, size = 0x12000, scoped, tag = 'internal scratch']
  #allocation2 [shape = 's32[1]{0}', space=sflag, size = 0x4, scoped, tag = 'scratch operand']
  #allocation3 [shape = 's32[]', space=sflag, size = 0x4, offset = 0, fixed_abs, tag = 'sflag constant byte address 0x0 - dummy sync flag']
  %s0 = inlined_call_operand.vmem [shape: f32[2,8,4], index: 0, kind: input, shape index: {}]
  %s1 = inlined_call_operand.vmem [shape: f32[2,8,4], index: 1, kind: output, shape index: {}]
  %s2 = sld [smem:[#allocation0]]
  $region36: #{base_model_forward.1} parent=0
    _
  %s4 = ssub.s32 1, %s2
  %s5 = scalar_select 0, %s4, %s2
  %p7 = scmp.lt.u32.totalorder 16, 8
  %p8 = pneg %p7
  // Predicated region
  $region2: #{base_model_forward.1} parent=0 // pred_check
    _
  $region3: #{base_model_forward.1} parent=0 // pred_check_branch
    %10 = sbr.rel (%p7) target = $region5
  $region4: #{base_model_forward.1} parent=0 // pred_region
    %s26 = sand.u32 16, 7
    %p27 = scmp.eq.s32.totalorder %s26, 0
    // Predicated region
    $region17: #{base_model_forward.1} parent=4 // pred_check
      %p28 = pneg %p27
    $region18: #{base_model_forward.1} parent=4 // pred_check_branch
      %30 = sbr.rel (%p28) target = $region20
    $region19: #{base_model_forward.1} parent=4 // pred_region
      loop: start=0, step=1, limit=1
      $region21: #{base_model_forward.1} parent=19 // loop_pre_header
        _
      $region22: #{base_model_forward.1} parent=19 // loop_header
        %s32 = sphi 0, %s36
        %p33 = scmp.ge.s32.totalorder %s32, 1
        %s37 = sphi %s0, %s0
        %s38 = sphi %s1, %s1
      $region23: #{base_model_forward.1} parent=19 // loop_header_branch
        %35 = sbr.rel (%p33) target = $region27
      $region24: #{base_model_forward.1} parent=19 // loop_body
        %v39 = vld [vmem:[%s37] sm:$0xff]
        %40 = vst [vmem:[%s38] sm:$0xff] %v39
        %v41 = vld [vmem:[%s37 + $0x8] sm:$0xff]
        %42 = vst [vmem:[%s38 + $0x8] sm:$0xff] %v41
      $region25: #{base_model_forward.1} parent=19 // loop_footer
        %s36 = sadd.s32 1, %s32
      $region26: #{base_model_forward.1} parent=19 // loop_footer_branch
        %31 = sbr.rel target = $region22
      $region27: #{base_model_forward.1} parent=19 // loop_exit
        _
    $region20: #{base_model_forward.1} parent=4 // pred_fallthru
      _
    %p43 = pneg %p27
    // Predicated region
    $region28: #{base_model_forward.1} parent=4 // pred_check
      _
    $region29: #{base_model_forward.1} parent=4 // pred_check_branch
      %45 = sbr.rel (%p27) target = $region31
    $region30: #{base_model_forward.1} parent=4 // pred_region
      %s46 = sand.u32 16, 7
    $region31: #{base_model_forward.1} parent=4 // pred_fallthru
      _
  $region5: #{base_model_forward.1} parent=0 // pred_fallthru
    _
  // Predicated region
  $region6: #{base_model_forward.1} parent=0 // pred_check
    %p11 = pneg %p7
  $region7: #{base_model_forward.1} parent=0 // pred_check_branch
    %13 = sbr.rel (%p11) target = $region9
  $region8: #{base_model_forward.1} parent=0 // pred_region
    %s14 = sshll.u32 1, 16
    %s15 = ssub.s32 %s14, 1
    loop: start=0, step=1, limit=1
    $region10: #{base_model_forward.1} parent=8 // loop_pre_header
      _
    $region11: #{base_model_forward.1} parent=8 // loop_header
      %s17 = sphi 0, %s21
      %p18 = scmp.ge.s32.totalorder %s17, 1
      %s22 = sphi %s0, %s0
      %s23 = sphi %s1, %s1
    $region12: #{base_model_forward.1} parent=8 // loop_header_branch
      %20 = sbr.rel (%p18) target = $region16
    $region13: #{base_model_forward.1} parent=8 // loop_body
      %v24 = vld [vmem:[%s22] sm:%s15]
      %25 = vst [vmem:[%s23] sm:%s15] %v24
    $region14: #{base_model_forward.1} parent=8 // loop_footer
      %s21 = sadd.s32 1, %s17
    $region15: #{base_model_forward.1} parent=8 // loop_footer_branch
      %16 = sbr.rel target = $region11
    $region16: #{base_model_forward.1} parent=8 // loop_exit
      _
  $region9: #{base_model_forward.1} parent=0 // pred_fallthru
    _
  // Predicated region
  $region32: #{base_model_forward.1} parent=0 // pred_check
    _
  $region33: #{base_model_forward.1} parent=0 // pred_check_branch
    %49 = sbr.rel (0) target = $region35
  $region34: #{base_model_forward.1} parent=0 // pred_region
    %50 = vsyncadd [#allocation2], 256
  $region35: #{base_model_forward.1} parent=0 // pred_fallthru
    _
  %s51 = smul.u32 2, 8
  %s52 = smul.u32 %s51, 1
  %s53 = sshll.u32 %s52, 4
  %54 = dma.done [#allocation2], %s53
  %55 = vsyncmov [#allocation2]
  %s56 = vpop.sfrf %55
  %p57 = scmp.eq.s32.totalorder %s56, 0
  %p58 = pneg %p57
  %60 = shalt.err (%p58)

</llo_original>
